<compile_context>
chip_gen: v6e
topology: v6e:2x2x1
jax: 0.10.0
libtpu: 0.0.40
codegen_flags: <defaults>
</compile_context>

<pallas_src>
import numpy as np
import jax
import jax.numpy as jnp
from jax.experimental import pallas as pl
from jax.experimental.pallas import tpu as pltpu

_LN_EPS = 1e-5  # nn.LayerNorm default


# ----------------------------- in-kernel helpers -----------------------------

def _erf_approx(x):
    # Abramowitz & Stegun 7.1.26 rational approximation, |err| <= 1.5e-7 in f32.
    # The divide goes to the EUP via pl.reciprocal(approx=True); exp is EUP too,
    # so only a handful of VALU mul/adds remain per element.
    a1, a2, a3, a4, a5 = (0.254829592, -0.284496736, 1.421413741,
                          -1.453152027, 1.061405429)
    p = 0.3275911
    ax = jnp.abs(x)
    t = pl.reciprocal(1.0 + p * ax, approx=True)
    poly = ((((a5 * t + a4) * t + a3) * t + a2) * t + a1) * t
    y = 1.0 - poly * jnp.exp(-ax * ax)
    return jnp.where(x >= 0, y, -y)


def _gelu_exact(x):
    # nn.GELU() default (approximate='none'): 0.5 * x * (1 + erf(x / sqrt(2)))
    return 0.5 * x * (1.0 + _erf_approx(x * 0.7071067811865476))


# ----------------------------- fused Pallas kernel -----------------------------

def _projection_head_kernel(x_ref, w1_ref, w2_ref, bln_ref, o_ref):
    # x_ref : (TM, E) native dtype      w1_ref: (E, P) bf16   w2_ref: (P, P) bf16
    # bln_ref: (4, P) f32  rows = [b1, b2, ln_gamma, ln_beta]
    # o_ref : (TM, P) out_dtype
    bln = bln_ref[...]
    b1, b2 = bln[0:1, :], bln[1:2, :]
    gamma, beta = bln[2:3, :], bln[3:4, :]

    # Linear 1 (MXU: bf16 operands, f32 accumulation).  Cast the tile in-kernel
    # so the wrapper never pays a separate HBM cast pass over x.
    x_bf = x_ref[...].astype(jnp.bfloat16)
    proj = jnp.dot(x_bf, w1_ref[...],
                   preferred_element_type=jnp.float32) + b1

    # GELU (exact erf form) in f32; heavy math on EUP, light VALU load.
    h = _gelu_exact(proj)

    # Linear 2 (MXU)
    y = jnp.dot(h.astype(jnp.bfloat16), w2_ref[...],
                preferred_element_type=jnp.float32) + b2

    # TODO(synk): Dropout(p=0.1) is identity here (eval-mode semantics);
    # training-mode masking would use pltpu.prng_seed / prng_random_bits.
    z = y + proj                                        # residual add (f32)

    # LayerNorm over the feature axis, statistics kept in f32.
    mean = jnp.mean(z, axis=-1, keepdims=True)
    var = jnp.mean(jnp.square(z - mean), axis=-1, keepdims=True)
    inv = jax.lax.rsqrt(var + _LN_EPS)
    o_ref[...] = ((z - mean) * inv * gamma + beta).astype(o_ref.dtype)


# ----------------------------- wrapper -----------------------------

def _round_up(x, m):
    return (x + m - 1) // m * m


def projection_head(x, params, *, out_dtype=jnp.float32):
    """x: (..., embedding_dim) float array -> (..., projection_dim) out_dtype."""
    lead_shape = x.shape[:-1]
    E = x.shape[-1]
    P = params["w1"].shape[1]

    x2 = x.reshape(-1, E)            # NATIVE dtype -- no host-side cast pass
    M = x2.shape[0]

    # Pad only to a multiple of 16 (<=15 rows), never to a multiple of TM.
    Mp = _round_up(max(M, 1), 16)
    if Mp != M:
        x2 = jnp.pad(x2, ((0, Mp - M), (0, 0)))

    # Row tile: memory-bound op -> large tiles (512-1024) to amortize per-step
    # overhead; keep >=2 grid steps when there is enough work so v7x's two
    # TensorCores both get "parallel" slices; 1024-row cap respects v7x VMEM.
    if Mp <= 512:
        TM = Mp
    elif Mp <= 2048:
        TM = 512
    else:
        TM = 1024
    grid = (pl.cdiv(Mp, TM),)        # ragged last tile handled by Pallas masking

    # VMEM budget from actual need (x + out tiles double-buffered, weights,
    # packed bias/LN params, f32 intermediates) with ~2x headroom.
    x_bytes = jnp.dtype(x2.dtype).itemsize
    o_bytes = jnp.dtype(out_dtype).itemsize
    vmem_need = (2 * TM * E * x_bytes          # x tiles
                 + 2 * TM * P * o_bytes        # out tiles
                 + 2 * (E * P + P * P) * 2     # bf16 weights (double-buffered)
                 + 2 * 4 * P * 4               # packed bias / LN params
                 + 6 * TM * P * 4)             # f32 intermediates headroom
    vmem_limit = int(min(64 * 1024 * 1024, max(16 * 1024 * 1024, 2 * vmem_need)))

    out = pl.pallas_call(
        _projection_head_kernel,
        out_shape=jax.ShapeDtypeStruct((Mp, P), out_dtype),
        grid=grid,
        in_specs=[
            pl.BlockSpec((TM, E), lambda i: (i, 0)),    # x rows (native dtype)
            pl.BlockSpec((E, P), lambda i: (0, 0)),     # W1 (bf16, resident)
            pl.BlockSpec((P, P), lambda i: (0, 0)),     # W2 (bf16, resident)
            pl.BlockSpec((4, P), lambda i: (0, 0)),     # [b1,b2,gamma,beta] f32
        ],
        out_specs=pl.BlockSpec((TM, P), lambda i: (i, 0)),
        compiler_params=pltpu.CompilerParams(
            dimension_semantics=("parallel",),           # shard rows across TCs
            vmem_limit_bytes=vmem_limit,
        ),
    )(x2, params["w1"], params["w2"], params["bln"])

    if Mp != M:
        out = out[:M]
    return out.reshape(*lead_shape, P)


# ----------------------------- parameters -----------------------------

def init_projection_head_params(key, embedding_dim, projection_dim=768):
    k1, k2, k3, k4 = jax.random.split(key, 4)

    def linear_init(kw, kb, fan_in, fan_out):
        bound = 1.0 / np.sqrt(fan_in)                   # nn.Linear default init
        w = jax.random.uniform(kw, (fan_in, fan_out), jnp.float32, -bound, bound)
        b = jax.random.uniform(kb, (fan_out,), jnp.float32, -bound, bound)
        return w.astype(jnp.bfloat16), b                # weights stored bf16 (MXU dtype)

    w1, b1 = linear_init(k1, k2, embedding_dim, projection_dim)
    w2, b2 = linear_init(k3, k4, projection_dim, projection_dim)
    # Pack b1 / b2 / LN-gamma / LN-beta into one (4, P) f32 array -> single DMA.
    bln = jnp.stack([b1, b2,
                     jnp.ones((projection_dim,), jnp.float32),
                     jnp.zeros((projection_dim,), jnp.float32)], axis=0)
    return {"w1": w1, "w2": w2, "bln": bln}


# ----------------------------- pure-JAX reference -----------------------------

def projection_head_ref(x, params):
    """Reference with the same mixed-precision policy (bf16 matmuls / f32 rest)."""
    E = x.shape[-1]
    P = params["w1"].shape[1]
    b1, b2, gamma, beta = (params["bln"][i] for i in range(4))
    xf = x.reshape(-1, E)
    proj = jnp.dot(xf.astype(jnp.bfloat16), params["w1"],
                   preferred_element_type=jnp.float32) + b1
    h = jax.nn.gelu(proj, approximate=False)            # exact (erf) GELU
    y = jnp.dot(h.astype(jnp.bfloat16), params["w2"],
                preferred_element_type=jnp.float32) + b2
    z = y + proj                                        # dropout = identity (eval)
    mean = jnp.mean(z, axis=-1, keepdims=True)
    var = jnp.mean(jnp.square(z - mean), axis=-1, keepdims=True)
    out = (z - mean) * jax.lax.rsqrt(var + _LN_EPS) * gamma + beta
    return out.reshape(*x.shape[:-1], P)


# ----------------------------- main -----------------------------

if __name__ == "__main__":
    key = jax.random.PRNGKey(0)
    pkey, xkey = jax.random.split(key)

    B, S, E, PROJ = 2, 8, 256, 256                      # small, TPU-layout-friendly
    params = init_projection_head_params(pkey, embedding_dim=E, projection_dim=PROJ)
    x = jax.random.normal(xkey, (B, S, E), jnp.float32)

    # f32-output path (matches module semantics); checked against reference.
    out = projection_head(x, params)
    jax.block_until_ready(out)
    assert out.shape == (B, S, PROJ)
    assert bool(jnp.all(jnp.isfinite(out)))

    ref = projection_head_ref(x, params)
    max_diff = float(jnp.max(jnp.abs(out - ref)))
    assert max_diff < 5e-2, f"mismatch vs reference: {max_diff}"

    # bf16-output path (halved writeback traffic; biggest win on v5e).
    out_bf16 = projection_head(x, params, out_dtype=jnp.bfloat16)
    jax.block_until_ready(out_bf16)
    diff_bf16 = float(jnp.max(jnp.abs(out_bf16.astype(jnp.float32) - out)))
    assert diff_bf16 < 1e-1, f"bf16-output mismatch: {diff_bf16}"

    print("KERNEL_OK")
</pallas_src>

<mosaic_0001>
module attributes {stable_mosaic.version = 11 : i64} {
  func.func @_projection_head_kernel(%arg0: i32, %arg1: memref<16x256xf32, #tpu.memory_space<vmem>>, %arg2: memref<256x256xbf16, #tpu.memory_space<vmem>>, %arg3: memref<256x256xbf16, #tpu.memory_space<vmem>>, %arg4: memref<4x256xf32, #tpu.memory_space<vmem>>, %arg5: memref<16x256xf32, #tpu.memory_space<vmem>>) attributes {dimension_semantics = [#tpu.dimension_semantics<parallel>], iteration_bounds = array<i64: 1>, scalar_prefetch = 0 : i64, scratch_operands = 0 : i64, tpu.core_type = #tpu.core_type<tc>, window_params = [{transform_indices = @transform_0, window_bounds = array<i64: 16, 256>}, {pipeline_mode = #tpu.pipeline_mode<synchronous>, transform_indices = @transform_1, window_bounds = array<i64: 256, 256>}, {pipeline_mode = #tpu.pipeline_mode<synchronous>, transform_indices = @transform_2, window_bounds = array<i64: 256, 256>}, {pipeline_mode = #tpu.pipeline_mode<synchronous>, transform_indices = @transform_3, window_bounds = array<i64: 4, 256>}, {transform_indices = @transform_4, window_bounds = array<i64: 16, 256>}]} {
    %c0 = arith.constant 0 : index
    %c0_0 = arith.constant 0 : index
    %0 = vector.load %arg4[%c0, %c0_0] : memref<4x256xf32, #tpu.memory_space<vmem>>, vector<4x256xf32>
    %1 = vector.extract_strided_slice %0 {offsets = [0, 0], sizes = [1, 256], strides = [1, 1]} : vector<4x256xf32> to vector<1x256xf32>
    %2 = vector.extract_strided_slice %0 {offsets = [1, 0], sizes = [1, 256], strides = [1, 1]} : vector<4x256xf32> to vector<1x256xf32>
    %3 = vector.extract_strided_slice %0 {offsets = [2, 0], sizes = [1, 256], strides = [1, 1]} : vector<4x256xf32> to vector<1x256xf32>
    %4 = vector.extract_strided_slice %0 {offsets = [3, 0], sizes = [1, 256], strides = [1, 1]} : vector<4x256xf32> to vector<1x256xf32>
    %c0_1 = arith.constant 0 : index
    %c0_2 = arith.constant 0 : index
    %5 = vector.load %arg1[%c0_1, %c0_2] : memref<16x256xf32, #tpu.memory_space<vmem>>, vector<16x256xf32>
    %6 = arith.truncf %5 : vector<16x256xf32> to vector<16x256xbf16>
    %c0_3 = arith.constant 0 : index
    %c0_4 = arith.constant 0 : index
    %7 = vector.load %arg2[%c0_3, %c0_4] : memref<256x256xbf16, #tpu.memory_space<vmem>>, vector<256x256xbf16>
    %cst = arith.constant dense<0.000000e+00> : vector<16x256xf32>
    %8 = tpu.matmul %6, %7, %cst {dimension_numbers = #tpu.dot_dimension_numbers<[1], [0], [0], [1], [0, 0, 1, 1], [], []>} : vector<16x256xbf16>, vector<256x256xbf16>, vector<16x256xf32> -> vector<16x256xf32>
    %9 = vector.broadcast %1 : vector<1x256xf32> to vector<16x256xf32>
    %10 = arith.addf %8, %9 : vector<16x256xf32>
    %cst_5 = arith.constant 5.000000e-01 : f32
    %11 = vector.broadcast %cst_5 : f32 to vector<16x256xf32>
    %12 = arith.mulf %11, %10 : vector<16x256xf32>
    %cst_6 = arith.constant 0.707106769 : f32
    %13 = vector.broadcast %cst_6 : f32 to vector<16x256xf32>
    %14 = arith.mulf %10, %13 : vector<16x256xf32>
    %15 = math.absf %14 : vector<16x256xf32>
    %cst_7 = arith.constant 0.327591091 : f32
    %16 = vector.broadcast %cst_7 : f32 to vector<16x256xf32>
    %17 = arith.mulf %16, %15 : vector<16x256xf32>
    %cst_8 = arith.constant 1.000000e+00 : f32
    %18 = vector.broadcast %cst_8 : f32 to vector<16x256xf32>
    %19 = arith.addf %18, %17 : vector<16x256xf32>
    %20 = tpu.reciprocal %19 {approx = true} : vector<16x256xf32> -> vector<16x256xf32>
    %cst_9 = arith.constant 1.06140542 : f32
    %21 = vector.broadcast %cst_9 : f32 to vector<16x256xf32>
    %22 = arith.mulf %21, %20 : vector<16x256xf32>
    %cst_10 = arith.constant -1.45315206 : f32
    %23 = vector.broadcast %cst_10 : f32 to vector<16x256xf32>
    %24 = arith.addf %22, %23 : vector<16x256xf32>
    %25 = arith.mulf %24, %20 : vector<16x256xf32>
    %cst_11 = arith.constant 1.42141378 : f32
    %26 = vector.broadcast %cst_11 : f32 to vector<16x256xf32>
    %27 = arith.addf %25, %26 : vector<16x256xf32>
    %28 = arith.mulf %27, %20 : vector<16x256xf32>
    %cst_12 = arith.constant -0.284496725 : f32
    %29 = vector.broadcast %cst_12 : f32 to vector<16x256xf32>
    %30 = arith.addf %28, %29 : vector<16x256xf32>
    %31 = arith.mulf %30, %20 : vector<16x256xf32>
    %cst_13 = arith.constant 0.254829586 : f32
    %32 = vector.broadcast %cst_13 : f32 to vector<16x256xf32>
    %33 = arith.addf %31, %32 : vector<16x256xf32>
    %34 = arith.mulf %33, %20 : vector<16x256xf32>
    %cst_14 = arith.constant 0.000000e+00 : f32
    %35 = vector.broadcast %cst_14 : f32 to vector<16x256xf32>
    %36 = arith.subf %35, %15 : vector<16x256xf32>
    %37 = arith.mulf %36, %15 : vector<16x256xf32>
    %38 = math.exp %37 : vector<16x256xf32>
    %39 = arith.mulf %34, %38 : vector<16x256xf32>
    %cst_15 = arith.constant 1.000000e+00 : f32
    %40 = vector.broadcast %cst_15 : f32 to vector<16x256xf32>
    %41 = arith.subf %40, %39 : vector<16x256xf32>
    %cst_16 = arith.constant 0.000000e+00 : f32
    %42 = vector.broadcast %cst_16 : f32 to vector<16x256xf32>
    %43 = arith.cmpf oge, %14, %42 : vector<16x256xf32>
    %cst_17 = arith.constant 0.000000e+00 : f32
    %44 = vector.broadcast %cst_17 : f32 to vector<16x256xf32>
    %45 = arith.subf %44, %41 : vector<16x256xf32>
    %46 = arith.select %43, %41, %45 : vector<16x256xi1>, vector<16x256xf32>
    %cst_18 = arith.constant 1.000000e+00 : f32
    %47 = vector.broadcast %cst_18 : f32 to vector<16x256xf32>
    %48 = arith.addf %47, %46 : vector<16x256xf32>
    %49 = arith.mulf %12, %48 : vector<16x256xf32>
    %50 = arith.truncf %49 : vector<16x256xf32> to vector<16x256xbf16>
    %c0_19 = arith.constant 0 : index
    %c0_20 = arith.constant 0 : index
    %51 = vector.load %arg3[%c0_19, %c0_20] : memref<256x256xbf16, #tpu.memory_space<vmem>>, vector<256x256xbf16>
    %cst_21 = arith.constant dense<0.000000e+00> : vector<16x256xf32>
    %52 = tpu.matmul %50, %51, %cst_21 {dimension_numbers = #tpu.dot_dimension_numbers<[1], [0], [0], [1], [0, 0, 1, 1], [], []>} : vector<16x256xbf16>, vector<256x256xbf16>, vector<16x256xf32> -> vector<16x256xf32>
    %53 = vector.broadcast %2 : vector<1x256xf32> to vector<16x256xf32>
    %54 = arith.addf %52, %53 : vector<16x256xf32>
    %55 = arith.addf %54, %10 : vector<16x256xf32>
    %cst_22 = arith.constant dense<0.000000e+00> : vector<16xf32>
    %56 = vector.multi_reduction <add>, %55, %cst_22 [1] : vector<16x256xf32> to vector<16xf32>
    %57 = vector.shape_cast %56 : vector<16xf32> to vector<16x1xf32>
    %cst_23 = arith.constant 2.560000e+02 : f32
    %58 = vector.broadcast %cst_23 : f32 to vector<16x1xf32>
    %59 = arith.divf %57, %58 : vector<16x1xf32>
    %60 = vector.broadcast %59 : vector<16x1xf32> to vector<16x256xf32>
    %61 = arith.subf %55, %60 : vector<16x256xf32>
    %62 = arith.mulf %61, %61 : vector<16x256xf32>
    %cst_24 = arith.constant dense<0.000000e+00> : vector<16xf32>
    %63 = vector.multi_reduction <add>, %62, %cst_24 [1] : vector<16x256xf32> to vector<16xf32>
    %64 = vector.shape_cast %63 : vector<16xf32> to vector<16x1xf32>
    %cst_25 = arith.constant 2.560000e+02 : f32
    %65 = vector.broadcast %cst_25 : f32 to vector<16x1xf32>
    %66 = arith.divf %64, %65 : vector<16x1xf32>
    %cst_26 = arith.constant 9.99999974E-6 : f32
    %67 = vector.broadcast %cst_26 : f32 to vector<16x1xf32>
    %68 = arith.addf %66, %67 : vector<16x1xf32>
    %69 = math.rsqrt %68 : vector<16x1xf32>
    %70 = vector.broadcast %59 : vector<16x1xf32> to vector<16x256xf32>
    %71 = arith.subf %55, %70 : vector<16x256xf32>
    %72 = vector.broadcast %69 : vector<16x1xf32> to vector<16x256xf32>
    %73 = arith.mulf %71, %72 : vector<16x256xf32>
    %74 = vector.broadcast %3 : vector<1x256xf32> to vector<16x256xf32>
    %75 = arith.mulf %73, %74 : vector<16x256xf32>
    %76 = vector.broadcast %4 : vector<1x256xf32> to vector<16x256xf32>
    %77 = arith.addf %75, %76 : vector<16x256xf32>
    %c0_27 = arith.constant 0 : index
    %c0_28 = arith.constant 0 : index
    %78 = vector.load %arg5[%c0_27, %c0_28] : memref<16x256xf32, #tpu.memory_space<vmem>>, vector<16x256xf32>
    tpu.vector_store %arg5[%c0_27, %c0_28], %77 {strides = array<i32>} : memref<16x256xf32, #tpu.memory_space<vmem>>, vector<16x256xf32>,
    return
  }
  func.func @transform_0(%arg0: i32) -> (i32, i32) {
    %c0_i32 = arith.constant 0 : i32
    %c0_i32_0 = arith.constant 0 : i32
    return %arg0, %c0_i32 : i32, i32
  }
  func.func @transform_1(%arg0: i32) -> (i32, i32) {
    %c0_i32 = arith.constant 0 : i32
    %c0_i32_0 = arith.constant 0 : i32
    %c0_i32_1 = arith.constant 0 : i32
    return %c0_i32, %c0_i32_0 : i32, i32
  }
  func.func @transform_2(%arg0: i32) -> (i32, i32) {
    %c0_i32 = arith.constant 0 : i32
    %c0_i32_0 = arith.constant 0 : i32
    %c0_i32_1 = arith.constant 0 : i32
    return %c0_i32, %c0_i32_0 : i32, i32
  }
  func.func @transform_3(%arg0: i32) -> (i32, i32) {
    %c0_i32 = arith.constant 0 : i32
    %c0_i32_0 = arith.constant 0 : i32
    %c0_i32_1 = arith.constant 0 : i32
    return %c0_i32, %c0_i32_0 : i32, i32
  }
  func.func @transform_4(%arg0: i32) -> (i32, i32) {
    %c0_i32 = arith.constant 0 : i32
    %c0_i32_0 = arith.constant 0 : i32
    return %arg0, %c0_i32 : i32, i32
  }
}

</mosaic_0001>

<llo_original>
// kernel: tpu_custom_call.1
$region0: #{tpu_custom_call.1}
  #allocation0 [shape = 'u32[]', space=smem, size = 0x4, offset = 0x4, fixed_abs, tag = 'smem constant byte address 0x4 - core index']
  #allocation1 [shape = 'u32[144,128]{1,0:T(1,128)}', space=vmem, size = 0x12000, scoped, tag = 'internal scratch']
  %s0 = inlined_call_operand.hbm [shape: f32[16,256], index: 0, kind: input, shape index: {}]
  %s1 = inlined_call_operand.hbm [shape: bf16[256,256], index: 1, kind: input, shape index: {}]
  %s2 = inlined_call_operand.hbm [shape: bf16[256,256], index: 2, kind: input, shape index: {}]
  %s3 = inlined_call_operand.hbm [shape: f32[4,256], index: 3, kind: input, shape index: {}]
  %s4 = inlined_call_operand.hbm [shape: f32[16,256], index: 4, kind: output, shape index: {}]
  %s5 = sld [smem:[#allocation0]]
  $region42: #{tpu_custom_call.1} parent=0
    _
  %s7 = ssub.s32 1, %s5
  %s8 = scalar_select 0, %s7, %s5
  $region1: #{tpu_custom_call.1} parent=0
    #allocation2 [shape = 'u8[16384]{0}', space=vmem, size = 0x4000, scoped, tag = 'input window, operand 0, single buffered']
    #allocation3 [shape = 's32[1]{0}', space=sflag, size = 0x4, scoped, tag = 'scoped memory for tpu_custom_call.1']
    #allocation4 [shape = 's32[1]{0}', space=sflag, size = 0x4, scoped, tag = 'scoped memory for tpu_custom_call.1']
    #allocation5 [shape = 'u8[131072]{0}', space=vmem, size = 0x20000, scoped, tag = 'input window, operand 1, single buffered']
    #allocation6 [shape = 's32[1]{0}', space=sflag, size = 0x4, scoped, tag = 'scoped memory for tpu_custom_call.1']
    #allocation7 [shape = 'u8[131072]{0}', space=vmem, size = 0x20000, scoped, tag = 'input window, operand 2, single buffered']
    #allocation8 [shape = 'u8[4096]{0}', space=vmem, size = 0x1000, scoped, tag = 'input window, operand 3, single buffered']
    #allocation9 [shape = 's32[1]{0}', space=sflag, size = 0x4, scoped, tag = 'scoped memory for tpu_custom_call.1']
    #allocation10 [shape = 'u8[16384]{0}', space=vmem, size = 0x4000, scoped, tag = 'output window, operand 0, single buffered']
    %9 = vsyncpa [#allocation3], 0
    %10 = vsyncpa [#allocation6], 0
    %11 = vsyncpa [#allocation9], 0
    %12 = vsyncpa [#allocation4], 0
    // Predicated region
    $region2: #{tpu_custom_call.1} parent=1 // pred_check
      _
    $region3: #{tpu_custom_call.1} parent=1 // pred_check_branch
      %14 = sbr.rel (0) target = $region5
    $region4: #{tpu_custom_call.1} parent=1 // pred_region
      %s16 = ssub.s32 512, 512
      %17 = vsyncadd [#allocation3], %s16
      %s18 = sshll.u32 [#allocation2], 4
      %s19 = int_to_ptr.vmem [resolvable:$true] %s18
      %24 = dma.hbm_to_vmem [thread:$0]  %s0, 512, %s19, [#allocation3], 256, 256, 16
    $region5: #{tpu_custom_call.1} parent=1 // pred_fallthru
      _
    // Predicated region
    $region6: #{tpu_custom_call.1} parent=1 // pred_check
      _
    $region7: #{tpu_custom_call.1} parent=1 // pred_check_branch
      %26 = sbr.rel (0) target = $region9
    $region8: #{tpu_custom_call.1} parent=1 // pred_region
      %s28 = ssub.s32 4096, 4096
      %29 = vsyncadd [#allocation6], %s28
      %s30 = sshll.u32 [#allocation5], 4
      %s31 = int_to_ptr.vmem [resolvable:$true] %s30
      %36 = dma.hbm_to_vmem [thread:$0]  %s1, 4096, %s31, [#allocation6], 128, 128, 8
    $region9: #{tpu_custom_call.1} parent=1 // pred_fallthru
      _
    // Predicated region
    $region10: #{tpu_custom_call.1} parent=1 // pred_check
      _
    $region11: #{tpu_custom_call.1} parent=1 // pred_check_branch
      %38 = sbr.rel (0) target = $region13
    $region12: #{tpu_custom_call.1} parent=1 // pred_region
      %s40 = ssub.s32 4096, 4096
      %41 = vsyncadd [#allocation6], %s40
      %s42 = sshll.u32 [#allocation7], 4
      %s43 = int_to_ptr.vmem [resolvable:$true] %s42
      %48 = dma.hbm_to_vmem [thread:$0]  %s2, 4096, %s43, [#allocation6], 128, 128, 8
    $region13: #{tpu_custom_call.1} parent=1 // pred_fallthru
      _
    // Predicated region
    $region14: #{tpu_custom_call.1} parent=1 // pred_check
      _
    $region15: #{tpu_custom_call.1} parent=1 // pred_check_branch
      %50 = sbr.rel (0) target = $region17
    $region16: #{tpu_custom_call.1} parent=1 // pred_region
      %s52 = ssub.s32 128, 128
      %53 = vsyncadd [#allocation9], %s52
      %s55 = sshll.u32 [#allocation8], 4
      %s56 = int_to_ptr.vmem [resolvable:$true] %s55
      %58 = dma.hbm_to_vmem [thread:$0]  %s3, 128, %s56, [#allocation9]
    $region17: #{tpu_custom_call.1} parent=1 // pred_fallthru
      _
    // Predicated region
    $region18: #{tpu_custom_call.1} parent=1 // pred_check
      _
    $region19: #{tpu_custom_call.1} parent=1 // pred_check_branch
      %60 = sbr.rel (0) target = $region21
    $region20: #{tpu_custom_call.1} parent=1 // pred_region
      %61 = dma.done [#allocation3], 512
    $region21: #{tpu_custom_call.1} parent=1 // pred_fallthru
      _
    // Predicated region
    $region22: #{tpu_custom_call.1} parent=1 // pred_check
      _
    $region23: #{tpu_custom_call.1} parent=1 // pred_check_branch
      %63 = sbr.rel (0) target = $region25
    $region24: #{tpu_custom_call.1} parent=1 // pred_region
      %64 = dma.done [#allocation6], 4096
    $region25: #{tpu_custom_call.1} parent=1 // pred_fallthru
      _
    // Predicated region
    $region26: #{tpu_custom_call.1} parent=1 // pred_check
      _
    $region27: #{tpu_custom_call.1} parent=1 // pred_check_branch
      %66 = sbr.rel (0) target = $region29
    $region28: #{tpu_custom_call.1} parent=1 // pred_region
      %67 = dma.done [#allocation6], 4096
    $region29: #{tpu_custom_call.1} parent=1 // pred_fallthru
      _
    // Predicated region
    $region30: #{tpu_custom_call.1} parent=1 // pred_check
      _
    $region31: #{tpu_custom_call.1} parent=1 // pred_check_branch
      %69 = sbr.rel (0) target = $region33
    $region32: #{tpu_custom_call.1} parent=1 // pred_region
      %70 = dma.done [#allocation9], 128
    $region33: #{tpu_custom_call.1} parent=1 // pred_fallthru
      _
    %v71 = vld [vmem:[#allocation8] sm:$0xff]
    %v72 = vld [vmem:[#allocation2] sm:$0xff]
    %v73 = vld [vmem:[#allocation2 + $0x8] sm:$0xff]
    %v74 = vld [vmem:[#allocation2 + $0x10] sm:$0xff]
    %v75 = vld [vmem:[#allocation2 + $0x18] sm:$0xff]
    %v76 = vpack.c.bf16 %v74, %v72
    %v77 = vpack.c.bf16 %v75, %v73
    %v78 = vld [vmem:[#allocation5] sm:$0xff]
    %v79 = vld [vmem:[#allocation5 + $0x8] sm:$0xff]
    %v80 = vld [vmem:[#allocation5 + $0x10] sm:$0xff]
    %v81 = vld [vmem:[#allocation5 + $0x18] sm:$0xff]
    %v82 = vld [vmem:[#allocation5 + $0x20] sm:$0xff]
    %v83 = vld [vmem:[#allocation5 + $0x28] sm:$0xff]
    %v84 = vld [vmem:[#allocation5 + $0x30] sm:$0xff]
    %v85 = vld [vmem:[#allocation5 + $0x38] sm:$0xff]
    %v86 = vld [vmem:[#allocation5 + $0x40] sm:$0xff]
    %v87 = vld [vmem:[#allocation5 + $0x48] sm:$0xff]
    %v88 = vld [vmem:[#allocation5 + $0x50] sm:$0xff]
    %v89 = vld [vmem:[#allocation5 + $0x58] sm:$0xff]
    %v90 = vld [vmem:[#allocation5 + $0x60] sm:$0xff]
    %v91 = vld [vmem:[#allocation5 + $0x68] sm:$0xff]
    %v92 = vld [vmem:[#allocation5 + $0x70] sm:$0xff]
    %v93 = vld [vmem:[#allocation5 + $0x78] sm:$0xff]
    %v94 = vld [vmem:[#allocation5 + $0x80] sm:$0xff]
    %v95 = vld [vmem:[#allocation5 + $0x88] sm:$0xff]
    %v96 = vld [vmem:[#allocation5 + $0x90] sm:$0xff]
    %v97 = vld [vmem:[#allocation5 + $0x98] sm:$0xff]
    %v98 = vld [vmem:[#allocation5 + $0xa0] sm:$0xff]
    %v99 = vld [vmem:[#allocation5 + $0xa8] sm:$0xff]
    %v100 = vld [vmem:[#allocation5 + $0xb0] sm:$0xff]
    %v101 = vld [vmem:[#allocation5 + $0xb8] sm:$0xff]
    %v102 = vld [vmem:[#allocation5 + $0xc0] sm:$0xff]
    %v103 = vld [vmem:[#allocation5 + $0xc8] sm:$0xff]
    %v104 = vld [vmem:[#allocation5 + $0xd0] sm:$0xff]
    %v105 = vld [vmem:[#allocation5 + $0xd8] sm:$0xff]
    %v106 = vld [vmem:[#allocation5 + $0xe0] sm:$0xff]
    %v107 = vld [vmem:[#allocation5 + $0xe8] sm:$0xff]
    %v108 = vld [vmem:[#allocation5 + $0xf0] sm:$0xff]
    %v109 = vld [vmem:[#allocation5 + $0xf8] sm:$0xff]
    %v111 = vlaneseq
    %v112 = vshrl.u32 %v111, 7
    %v113 = vsub.s32 0, %v112
    %v114 = vrot.slane %v71, %v113
    %v115 = vlaneseq
    %v116 = vshrl.u32 %v115, 7
    %v117 = vsub.s32 4, %v116
    %v118 = vrot.slane %v71, %v117
    %v121 = vlaneseq
    %v122 = vshrl.u32 %v121, 7
    %v123 = vsub.s32 0, %v122
    %v124 = vrot.slane %v114, %v123
    %v125 = vlaneseq
    %v126 = vshrl.u32 %v125, 7
    %v127 = vsub.s32 0, %v126
    %v128 = vrot.slane %v118, %v127
    %v161 = vunpack.c.l.b16 %v78
    %v162 = vunpack.c.h.b16 %v78
    %v163 = vunpack.c.l.b16 %v79
    %v164 = vunpack.c.h.b16 %v79
    %v165 = vunpack.c.l.b16 %v80
    %v166 = vunpack.c.h.b16 %v80
    %v167 = vunpack.c.l.b16 %v81
    %v168 = vunpack.c.h.b16 %v81
    %v169 = vunpack.c.l.b16 %v82
    %v170 = vunpack.c.h.b16 %v82
    %v171 = vunpack.c.l.b16 %v83
    %v172 = vunpack.c.h.b16 %v83
    %v173 = vunpack.c.l.b16 %v84
    %v174 = vunpack.c.h.b16 %v84
    %v175 = vunpack.c.l.b16 %v85
    %v176 = vunpack.c.h.b16 %v85
    %v177 = vunpack.c.l.b16 %v86
    %v178 = vunpack.c.h.b16 %v86
    %v179 = vunpack.c.l.b16 %v87
    %v180 = vunpack.c.h.b16 %v87
    %v181 = vunpack.c.l.b16 %v88
    %v182 = vunpack.c.h.b16 %v88
    %v183 = vunpack.c.l.b16 %v89
    %v184 = vunpack.c.h.b16 %v89
    %v185 = vunpack.c.l.b16 %v90
    %v186 = vunpack.c.h.b16 %v90
    %v187 = vunpack.c.l.b16 %v91
    %v188 = vunpack.c.h.b16 %v91
    %v189 = vunpack.c.l.b16 %v92
    %v190 = vunpack.c.h.b16 %v92
    %v191 = vunpack.c.l.b16 %v93
    %v192 = vunpack.c.h.b16 %v93
    %v193 = vunpack.c.l.b16 %v94
    %v194 = vunpack.c.h.b16 %v94
    %v195 = vunpack.c.l.b16 %v95
    %v196 = vunpack.c.h.b16 %v95
    %v197 = vunpack.c.l.b16 %v96
    %v198 = vunpack.c.h.b16 %v96
    %v199 = vunpack.c.l.b16 %v97
    %v200 = vunpack.c.h.b16 %v97
    %v201 = vunpack.c.l.b16 %v98
    %v202 = vunpack.c.h.b16 %v98
    %v203 = vunpack.c.l.b16 %v99
    %v204 = vunpack.c.h.b16 %v99
    %v205 = vunpack.c.l.b16 %v100
    %v206 = vunpack.c.h.b16 %v100
    %v207 = vunpack.c.l.b16 %v101
    %v208 = vunpack.c.h.b16 %v101
    %v209 = vunpack.c.l.b16 %v102
    %v210 = vunpack.c.h.b16 %v102
    %v211 = vunpack.c.l.b16 %v103
    %v212 = vunpack.c.h.b16 %v103
    %v213 = vunpack.c.l.b16 %v104
    %v214 = vunpack.c.h.b16 %v104
    %v215 = vunpack.c.l.b16 %v105
    %v216 = vunpack.c.h.b16 %v105
    %v217 = vunpack.c.l.b16 %v106
    %v218 = vunpack.c.h.b16 %v106
    %v219 = vunpack.c.l.b16 %v107
    %v220 = vunpack.c.h.b16 %v107
    %v221 = vunpack.c.l.b16 %v108
    %v222 = vunpack.c.h.b16 %v108
    %v223 = vunpack.c.l.b16 %v109
    %v224 = vunpack.c.h.b16 %v109
    %v225 = vpack.c.b16 %v163, %v161
    %v226 = vpack.c.b16 %v164, %v162
    %v227 = vpack.c.b16 %v167, %v165
    %v228 = vpack.c.b16 %v168, %v166
    %v229 = vpack.c.b16 %v171, %v169
    %v230 = vpack.c.b16 %v172, %v170
    %v231 = vpack.c.b16 %v175, %v173
    %v232 = vpack.c.b16 %v176, %v174
    %v233 = vpack.c.b16 %v179, %v177
    %v234 = vpack.c.b16 %v180, %v178
    %v235 = vpack.c.b16 %v183, %v181
    %v236 = vpack.c.b16 %v184, %v182
    %v237 = vpack.c.b16 %v187, %v185
    %v238 = vpack.c.b16 %v188, %v186
    %v239 = vpack.c.b16 %v191, %v189
    %v240 = vpack.c.b16 %v192, %v190
    %v241 = vpack.c.b16 %v195, %v193
    %v242 = vpack.c.b16 %v196, %v194
    %v243 = vpack.c.b16 %v199, %v197
    %v244 = vpack.c.b16 %v200, %v198
    %v245 = vpack.c.b16 %v203, %v201
    %v246 = vpack.c.b16 %v204, %v202
    %v247 = vpack.c.b16 %v207, %v205
    %v248 = vpack.c.b16 %v208, %v206
    %v249 = vpack.c.b16 %v211, %v209
    %v250 = vpack.c.b16 %v212, %v210
    %v251 = vpack.c.b16 %v215, %v213
    %v252 = vpack.c.b16 %v216, %v214
    %v253 = vpack.c.b16 %v219, %v217
    %v254 = vpack.c.b16 %v220, %v218
    %v255 = vpack.c.b16 %v223, %v221
    %v256 = vpack.c.b16 %v224, %v222
    %289 = vmatprep.subr.bf16.mxu0 %v240
    %290 = vmatpush1.bf16.msra.mxu0 %v239
    %291 = vmatprep.subr.bf16.mxu0 %v238
    %292 = vmatpush1.bf16.msra.mxu0 %v237
    %293 = vmatprep.subr.bf16.mxu0 %v236
    %294 = vmatpush1.bf16.msra.mxu0 %v235
    %295 = vmatprep.subr.bf16.mxu0 %v234
    %296 = vmatpush1.bf16.msra.mxu0 %v233
    %297 = vmatprep.subr.bf16.mxu0 %v232
    %298 = vmatpush1.bf16.msra.mxu0 %v231
    %299 = vmatprep.subr.bf16.mxu0 %v230
    %300 = vmatpush1.bf16.msra.mxu0 %v229
    %301 = vmatprep.subr.bf16.mxu0 %v228
    %302 = vmatpush1.bf16.msra.mxu0 %v227
    %303 = vmatprep.subr.bf16.mxu0 %v226
    %304 = vmatpush1.bf16.msra.mxu0 %v225
    %305 = vmatprep.subr.bf16.mxu0 %v256
    %306 = vmatpush2.bf16.msra.mxu0 %v255
    %307 = vmatprep.subr.bf16.mxu0 %v254
    %308 = vmatpush2.bf16.msra.mxu0 %v253
    %309 = vmatprep.subr.bf16.mxu0 %v252
    %310 = vmatpush2.bf16.msra.mxu0 %v251
    %311 = vmatprep.subr.bf16.mxu0 %v250
    %312 = vmatpush2.bf16.msra.mxu0 %v249
    %313 = vmatprep.subr.bf16.mxu0 %v248
    %314 = vmatpush2.bf16.msra.mxu0 %v247
    %315 = vmatprep.subr.bf16.mxu0 %v246
    %316 = vmatpush2.bf16.msra.mxu0 %v245
    %317 = vmatprep.subr.bf16.mxu0 %v244
    %318 = vmatpush2.bf16.msra.mxu0 %v243
    %319 = vmatprep.subr.bf16.mxu0 %v242
    %320 = vmatpush2.bf16.msra.mxu0 %v241
    %321 = vmatprep.mubr.bf16.mxu0 %v77
    %322 = vmatmul.mubr.bf16.gmra.mxu0 %v76
    %v323 = vpop.f32.mrf.mxu0
    %v324 = vadd.f32 %v124, %v323
    %v325 = vpop.f32.mrf.mxu0
    %v326 = vadd.f32 %v128, %v325
    %v327 = vpop.f32.mrf.mxu0
    %v328 = vadd.f32 %v124, %v327
    %v329 = vpop.f32.mrf.mxu0
    %v330 = vadd.f32 %v128, %v329
    %331 = vdwg.mxu0
    %v332 = vmul.f32 %v324, 0.5
    %v333 = vmul.f32 %v326, 0.5
    %v334 = vmul.f32 %v328, 0.5
    %v335 = vmul.f32 %v330, 0.5
    %v336 = vmul.f32 %v324, 0.70710677
    %v337 = vmul.f32 %v326, 0.70710677
    %v338 = vmul.f32 %v328, 0.70710677
    %v339 = vmul.f32 %v330, 0.70710677
    %v340 = vand.u32 2147483647, %v336
    %v341 = vand.u32 2147483647, %v337
    %v342 = vand.u32 2147483647, %v338
    %v343 = vand.u32 2147483647, %v339
    %v344 = vmul.f32 %v340, 0.3275911
    %v345 = vmul.f32 %v341, 0.3275911
    %v346 = vmul.f32 %v342, 0.3275911
    %v347 = vmul.f32 %v343, 0.3275911
    %v348 = vadd.f32 %v344, 1.0
    %v349 = vadd.f32 %v345, 1.0
    %v350 = vadd.f32 %v346, 1.0
    %v351 = vadd.f32 %v347, 1.0
    %v352 = vrcp.pop %v348
    %v353 = vrcp.pop %v349
    %v354 = vrcp.pop %v350
    %v355 = vrcp.pop %v351
    %v356 = vmul.f32 %v352, 1.0614054
    %v357 = vmul.f32 %v353, 1.0614054
    %v358 = vmul.f32 %v354, 1.0614054
    %v359 = vmul.f32 %v355, 1.0614054
    %v360 = vadd.f32 %v356, -1.4531521
    %v361 = vadd.f32 %v357, -1.4531521
    %v362 = vadd.f32 %v358, -1.4531521
    %v363 = vadd.f32 %v359, -1.4531521
    %v364 = vmul.f32 %v360, %v352
    %v365 = vmul.f32 %v361, %v353
    %v366 = vmul.f32 %v362, %v354
    %v367 = vmul.f32 %v363, %v355
    %v368 = vadd.f32 %v364, 1.4214138
    %v369 = vadd.f32 %v365, 1.4214138
    %v370 = vadd.f32 %v366, 1.4214138
    %v371 = vadd.f32 %v367, 1.4214138
    %v372 = vmul.f32 %v368, %v352
    %v373 = vmul.f32 %v369, %v353
    %v374 = vmul.f32 %v370, %v354
    %v375 = vmul.f32 %v371, %v355
    %v376 = vadd.f32 %v372, -0.28449672
    %v377 = vadd.f32 %v373, -0.28449672
    %v378 = vadd.f32 %v374, -0.28449672
    %v379 = vadd.f32 %v375, -0.28449672
    %v380 = vmul.f32 %v376, %v352
    %v381 = vmul.f32 %v377, %v353
    %v382 = vmul.f32 %v378, %v354
    %v383 = vmul.f32 %v379, %v355
    %v384 = vadd.f32 %v380, 0.2548296
    %v385 = vadd.f32 %v381, 0.2548296
    %v386 = vadd.f32 %v382, 0.2548296
    %v387 = vadd.f32 %v383, 0.2548296
    %v388 = vmul.f32 %v384, %v352
    %v389 = vmul.f32 %v385, %v353
    %v390 = vmul.f32 %v386, %v354
    %v391 = vmul.f32 %v387, %v355
    %v392 = vsub.f32 0.0, %v340
    %v393 = vsub.f32 0.0, %v341
    %v394 = vsub.f32 0.0, %v342
    %v395 = vsub.f32 0.0, %v343
    %v396 = vmul.f32 %v392, %v340
    %v397 = vmul.f32 %v393, %v341
    %v398 = vmul.f32 %v394, %v342
    %v399 = vmul.f32 %v395, %v343
    %v400 = vmul.f32 %v396, 1.442695
    %v401 = vpow.pop %v400
    %v402 = vmul.f32 %v397, 1.442695
    %v403 = vpow.pop %v402
    %v404 = vmul.f32 %v398, 1.442695
    %v405 = vpow.pop %v404
    %v406 = vmul.f32 %v399, 1.442695
    %v407 = vpow.pop %v406
    %v408 = vmul.f32 %v388, %v401
    %v409 = vmul.f32 %v389, %v403
    %v410 = vmul.f32 %v390, %v405
    %v411 = vmul.f32 %v391, %v407
    %v412 = vsub.f32 1.0, %v408
    %v413 = vsub.f32 1.0, %v409
    %v414 = vsub.f32 1.0, %v410
    %v415 = vsub.f32 1.0, %v411
    %vm416 = vcmp.ge.f32.partialorder %v336, 0.0
    %vm417 = vcmp.ge.f32.partialorder %v337, 0.0
    %vm418 = vcmp.ge.f32.partialorder %v338, 0.0
    %vm419 = vcmp.ge.f32.partialorder %v339, 0.0
    %v420 = vsub.f32 0.0, %v412
    %v421 = vsub.f32 0.0, %v413
    %v422 = vsub.f32 0.0, %v414
    %v423 = vsub.f32 0.0, %v415
    %v424 = vsel %vm416, %v412, %v420
    %v425 = vsel %vm417, %v413, %v421
    %v426 = vsel %vm418, %v414, %v422
    %v427 = vsel %vm419, %v415, %v423
    %v428 = vadd.f32 %v424, 1.0
    %v429 = vadd.f32 %v425, 1.0
    %v430 = vadd.f32 %v426, 1.0
    %v431 = vadd.f32 %v427, 1.0
    %v432 = vmul.f32 %v332, %v428
    %v433 = vmul.f32 %v333, %v429
    %v434 = vmul.f32 %v334, %v430
    %v435 = vmul.f32 %v335, %v431
    %v436 = vpack.c.bf16 %v434, %v432
    %v437 = vpack.c.bf16 %v435, %v433
    %v438 = vld [vmem:[#allocation7] sm:$0xff]
    %v439 = vld [vmem:[#allocation7 + $0x8] sm:$0xff]
    %v440 = vld [vmem:[#allocation7 + $0x10] sm:$0xff]
    %v441 = vld [vmem:[#allocation7 + $0x18] sm:$0xff]
    %v442 = vld [vmem:[#allocation7 + $0x20] sm:$0xff]
    %v443 = vld [vmem:[#allocation7 + $0x28] sm:$0xff]
    %v444 = vld [vmem:[#allocation7 + $0x30] sm:$0xff]
    %v445 = vld [vmem:[#allocation7 + $0x38] sm:$0xff]
    %v446 = vld [vmem:[#allocation7 + $0x40] sm:$0xff]
    %v447 = vld [vmem:[#allocation7 + $0x48] sm:$0xff]
    %v448 = vld [vmem:[#allocation7 + $0x50] sm:$0xff]
    %v449 = vld [vmem:[#allocation7 + $0x58] sm:$0xff]
    %v450 = vld [vmem:[#allocation7 + $0x60] sm:$0xff]
    %v451 = vld [vmem:[#allocation7 + $0x68] sm:$0xff]
    %v452 = vld [vmem:[#allocation7 + $0x70] sm:$0xff]
    %v453 = vld [vmem:[#allocation7 + $0x78] sm:$0xff]
    %v454 = vld [vmem:[#allocation7 + $0x80] sm:$0xff]
    %v455 = vld [vmem:[#allocation7 + $0x88] sm:$0xff]
    %v456 = vld [vmem:[#allocation7 + $0x90] sm:$0xff]
    %v457 = vld [vmem:[#allocation7 + $0x98] sm:$0xff]
    %v458 = vld [vmem:[#allocation7 + $0xa0] sm:$0xff]
    %v459 = vld [vmem:[#allocation7 + $0xa8] sm:$0xff]
    %v460 = vld [vmem:[#allocation7 + $0xb0] sm:$0xff]
    %v461 = vld [vmem:[#allocation7 + $0xb8] sm:$0xff]
    %v462 = vld [vmem:[#allocation7 + $0xc0] sm:$0xff]
    %v463 = vld [vmem:[#allocation7 + $0xc8] sm:$0xff]
    %v464 = vld [vmem:[#allocation7 + $0xd0] sm:$0xff]
    %v465 = vld [vmem:[#allocation7 + $0xd8] sm:$0xff]
    %v466 = vld [vmem:[#allocation7 + $0xe0] sm:$0xff]
    %v467 = vld [vmem:[#allocation7 + $0xe8] sm:$0xff]
    %v468 = vld [vmem:[#allocation7 + $0xf0] sm:$0xff]
    %v469 = vld [vmem:[#allocation7 + $0xf8] sm:$0xff]
    %v470 = vlaneseq
    %v471 = vshrl.u32 %v470, 7
    %v472 = vsub.s32 1, %v471
    %v473 = vrot.slane %v71, %v472
    %v474 = vlaneseq
    %v475 = vshrl.u32 %v474, 7
    %v476 = vsub.s32 5, %v475
    %v477 = vrot.slane %v71, %v476
    %v480 = vlaneseq
    %v481 = vshrl.u32 %v480, 7
    %v482 = vsub.s32 1, %v481
    %v483 = vrot.slane %v473, %v482
    %v484 = vlaneseq
    %v485 = vshrl.u32 %v484, 7
    %v486 = vsub.s32 1, %v485
    %v487 = vrot.slane %v477, %v486
    %v520 = vunpack.c.l.b16 %v438
    %v521 = vunpack.c.h.b16 %v438
    %v522 = vunpack.c.l.b16 %v439
    %v523 = vunpack.c.h.b16 %v439
    %v524 = vunpack.c.l.b16 %v440
    %v525 = vunpack.c.h.b16 %v440
    %v526 = vunpack.c.l.b16 %v441
    %v527 = vunpack.c.h.b16 %v441
    %v528 = vunpack.c.l.b16 %v442
    %v529 = vunpack.c.h.b16 %v442
    %v530 = vunpack.c.l.b16 %v443
    %v531 = vunpack.c.h.b16 %v443
    %v532 = vunpack.c.l.b16 %v444
    %v533 = vunpack.c.h.b16 %v444
    %v534 = vunpack.c.l.b16 %v445
    %v535 = vunpack.c.h.b16 %v445
    %v536 = vunpack.c.l.b16 %v446
    %v537 = vunpack.c.h.b16 %v446
    %v538 = vunpack.c.l.b16 %v447
    %v539 = vunpack.c.h.b16 %v447
    %v540 = vunpack.c.l.b16 %v448
    %v541 = vunpack.c.h.b16 %v448
    %v542 = vunpack.c.l.b16 %v449
    %v543 = vunpack.c.h.b16 %v449
    %v544 = vunpack.c.l.b16 %v450
    %v545 = vunpack.c.h.b16 %v450
    %v546 = vunpack.c.l.b16 %v451
    %v547 = vunpack.c.h.b16 %v451
    %v548 = vunpack.c.l.b16 %v452
    %v549 = vunpack.c.h.b16 %v452
    %v550 = vunpack.c.l.b16 %v453
    %v551 = vunpack.c.h.b16 %v453
    %v552 = vunpack.c.l.b16 %v454
    %v553 = vunpack.c.h.b16 %v454
    %v554 = vunpack.c.l.b16 %v455
    %v555 = vunpack.c.h.b16 %v455
    %v556 = vunpack.c.l.b16 %v456
    %v557 = vunpack.c.h.b16 %v456
    %v558 = vunpack.c.l.b16 %v457
    %v559 = vunpack.c.h.b16 %v457
    %v560 = vunpack.c.l.b16 %v458
    %v561 = vunpack.c.h.b16 %v458
    %v562 = vunpack.c.l.b16 %v459
    %v563 = vunpack.c.h.b16 %v459
    %v564 = vunpack.c.l.b16 %v460
    %v565 = vunpack.c.h.b16 %v460
    %v566 = vunpack.c.l.b16 %v461
    %v567 = vunpack.c.h.b16 %v461
    %v568 = vunpack.c.l.b16 %v462
    %v569 = vunpack.c.h.b16 %v462
    %v570 = vunpack.c.l.b16 %v463
    %v571 = vunpack.c.h.b16 %v463
    %v572 = vunpack.c.l.b16 %v464
    %v573 = vunpack.c.h.b16 %v464
    %v574 = vunpack.c.l.b16 %v465
    %v575 = vunpack.c.h.b16 %v465
    %v576 = vunpack.c.l.b16 %v466
    %v577 = vunpack.c.h.b16 %v466
    %v578 = vunpack.c.l.b16 %v467
    %v579 = vunpack.c.h.b16 %v467
    %v580 = vunpack.c.l.b16 %v468
    %v581 = vunpack.c.h.b16 %v468
    %v582 = vunpack.c.l.b16 %v469
    %v583 = vunpack.c.h.b16 %v469
    %v584 = vpack.c.b16 %v522, %v520
    %v585 = vpack.c.b16 %v523, %v521
    %v586 = vpack.c.b16 %v526, %v524
    %v587 = vpack.c.b16 %v527, %v525
    %v588 = vpack.c.b16 %v530, %v528
    %v589 = vpack.c.b16 %v531, %v529
    %v590 = vpack.c.b16 %v534, %v532
    %v591 = vpack.c.b16 %v535, %v533
    %v592 = vpack.c.b16 %v538, %v536
    %v593 = vpack.c.b16 %v539, %v537
    %v594 = vpack.c.b16 %v542, %v540
    %v595 = vpack.c.b16 %v543, %v541
    %v596 = vpack.c.b16 %v546, %v544
    %v597 = vpack.c.b16 %v547, %v545
    %v598 = vpack.c.b16 %v550, %v548
    %v599 = vpack.c.b16 %v551, %v549
    %v600 = vpack.c.b16 %v554, %v552
    %v601 = vpack.c.b16 %v555, %v553
    %v602 = vpack.c.b16 %v558, %v556
    %v603 = vpack.c.b16 %v559, %v557
    %v604 = vpack.c.b16 %v562, %v560
    %v605 = vpack.c.b16 %v563, %v561
    %v606 = vpack.c.b16 %v566, %v564
    %v607 = vpack.c.b16 %v567, %v565
    %v608 = vpack.c.b16 %v570, %v568
    %v609 = vpack.c.b16 %v571, %v569
    %v610 = vpack.c.b16 %v574, %v572
    %v611 = vpack.c.b16 %v575, %v573
    %v612 = vpack.c.b16 %v578, %v576
    %v613 = vpack.c.b16 %v579, %v577
    %v614 = vpack.c.b16 %v582, %v580
    %v615 = vpack.c.b16 %v583, %v581
    %648 = vmatprep.subr.bf16.mxu0 %v599
    %649 = vmatpush1.bf16.msra.mxu0 %v598
    %650 = vmatprep.subr.bf16.mxu0 %v597
    %651 = vmatpush1.bf16.msra.mxu0 %v596
    %652 = vmatprep.subr.bf16.mxu0 %v595
    %653 = vmatpush1.bf16.msra.mxu0 %v594
    %654 = vmatprep.subr.bf16.mxu0 %v593
    %655 = vmatpush1.bf16.msra.mxu0 %v592
    %656 = vmatprep.subr.bf16.mxu0 %v591
    %657 = vmatpush1.bf16.msra.mxu0 %v590
    %658 = vmatprep.subr.bf16.mxu0 %v589
    %659 = vmatpush1.bf16.msra.mxu0 %v588
    %660 = vmatprep.subr.bf16.mxu0 %v587
    %661 = vmatpush1.bf16.msra.mxu0 %v586
    %662 = vmatprep.subr.bf16.mxu0 %v585
    %663 = vmatpush1.bf16.msra.mxu0 %v584
    %664 = vmatprep.subr.bf16.mxu0 %v615
    %665 = vmatpush2.bf16.msra.mxu0 %v614
    %666 = vmatprep.subr.bf16.mxu0 %v613
    %667 = vmatpush2.bf16.msra.mxu0 %v612
    %668 = vmatprep.subr.bf16.mxu0 %v611
    %669 = vmatpush2.bf16.msra.mxu0 %v610
    %670 = vmatprep.subr.bf16.mxu0 %v609
    %671 = vmatpush2.bf16.msra.mxu0 %v608
    %672 = vmatprep.subr.bf16.mxu0 %v607
    %673 = vmatpush2.bf16.msra.mxu0 %v606
    %674 = vmatprep.subr.bf16.mxu0 %v605
    %675 = vmatpush2.bf16.msra.mxu0 %v604
    %676 = vmatprep.subr.bf16.mxu0 %v603
    %677 = vmatpush2.bf16.msra.mxu0 %v602
    %678 = vmatprep.subr.bf16.mxu0 %v601
    %679 = vmatpush2.bf16.msra.mxu0 %v600
    %680 = vmatprep.mubr.bf16.mxu0 %v437
    %681 = vmatmul.mubr.bf16.gmra.mxu0 %v436
    %v682 = vpop.f32.mrf.mxu0
    %v683 = vadd.f32 %v483, %v682
    %v684 = vpop.f32.mrf.mxu0
    %v685 = vadd.f32 %v487, %v684
    %v686 = vpop.f32.mrf.mxu0
    %v687 = vadd.f32 %v483, %v686
    %v688 = vpop.f32.mrf.mxu0
    %v689 = vadd.f32 %v487, %v688
    %690 = vdwg.mxu0
    %v691 = vadd.f32 %v683, %v324
    %v692 = vadd.f32 %v685, %v326
    %v693 = vadd.f32 %v687, %v328
    %v694 = vadd.f32 %v689, %v330
    %v695 = vadd.f32 %v691, %v692
    %696 = vadd.xlane.f32.xlu0 %v695
    %v697 = vpop.xlane.xlu0 %696
    %v698 = vadd.f32 %v693, %v694
    %699 = vadd.xlane.f32.xlu0 %v698
    %v700 = vpop.xlane.xlu0 %699
    %v701 = vrcp.pop 256.0
    %v702 = vmul.f32 %v697, %v701
    %v703 = vmul.f32 %v700, %v701
    %v704 = vsub.f32 %v691, %v702
    %v705 = vsub.f32 %v692, %v702
    %v706 = vsub.f32 %v693, %v703
    %v707 = vsub.f32 %v694, %v703
    %v708 = vmul.f32 %v704, %v704
    %v709 = vmul.f32 %v705, %v705
    %v710 = vmul.f32 %v706, %v706
    %v711 = vmul.f32 %v707, %v707
    %v712 = vadd.f32 %v708, %v709
    %713 = vadd.xlane.f32.xlu0 %v712
    %v714 = vpop.xlane.xlu0 %713
    %v715 = vadd.f32 %v710, %v711
    %716 = vadd.xlane.f32.xlu0 %v715
    %v717 = vpop.xlane.xlu0 %716
    %v718 = vmul.f32 %v714, %v701
    %v719 = vmul.f32 %v717, %v701
    %v720 = vadd.f32 %v718, 1e-05
    %v721 = vadd.f32 %v719, 1e-05
    %v722 = vrsqrt.pop %v720
    %v723 = vrsqrt.pop %v721
    %v724 = vmul.f32 %v704, %v722
    %v725 = vmul.f32 %v705, %v722
    %v726 = vmul.f32 %v706, %v723
    %v727 = vmul.f32 %v707, %v723
    %v728 = vlaneseq
    %v729 = vshrl.u32 %v728, 7
    %v730 = vsub.s32 2, %v729
    %v731 = vrot.slane %v71, %v730
    %v732 = vlaneseq
    %v733 = vshrl.u32 %v732, 7
    %v734 = vsub.s32 6, %v733
    %v735 = vrot.slane %v71, %v734
    %v738 = vlaneseq
    %v739 = vshrl.u32 %v738, 7
    %v740 = vsub.s32 2, %v739
    %v741 = vrot.slane %v731, %v740
    %v742 = vlaneseq
    %v743 = vshrl.u32 %v742, 7
    %v744 = vsub.s32 2, %v743
    %v745 = vrot.slane %v735, %v744
    %v746 = vmul.f32 %v724, %v741
    %v747 = vmul.f32 %v725, %v745
    %v748 = vmul.f32 %v726, %v741
    %v749 = vmul.f32 %v727, %v745
    %v750 = vlaneseq
    %v751 = vshrl.u32 %v750, 7
    %v752 = vsub.s32 3, %v751
    %v753 = vrot.slane %v71, %v752
    %v754 = vlaneseq
    %v755 = vshrl.u32 %v754, 7
    %v756 = vsub.s32 7, %v755
    %v757 = vrot.slane %v71, %v756
    %v760 = vlaneseq
    %v761 = vshrl.u32 %v760, 7
    %v762 = vsub.s32 3, %v761
    %v763 = vrot.slane %v753, %v762
    %v764 = vlaneseq
    %v765 = vshrl.u32 %v764, 7
    %v766 = vsub.s32 3, %v765
    %v767 = vrot.slane %v757, %v766
    %v768 = vadd.f32 %v746, %v763
    %v769 = vadd.f32 %v747, %v767
    %v770 = vadd.f32 %v748, %v763
    %v771 = vadd.f32 %v749, %v767
    %772 = vst [vmem:[#allocation10] sm:$0xff] %v768
    %773 = vst [vmem:[#allocation10 + $0x8] sm:$0xff] %v769
    %774 = vst [vmem:[#allocation10 + $0x10] sm:$0xff] %v770
    %775 = vst [vmem:[#allocation10 + $0x18] sm:$0xff] %v771
    // Predicated region
    $region34: #{tpu_custom_call.1} parent=1 // pred_check
      _
    $region35: #{tpu_custom_call.1} parent=1 // pred_check_branch
      %777 = sbr.rel (0) target = $region37
    $region36: #{tpu_custom_call.1} parent=1 // pred_region
      %s779 = ssub.s32 512, 512
      %780 = vsyncadd [#allocation4], %s779
      %s781 = sshll.u32 [#allocation10], 4
      %s782 = int_to_ptr.vmem [resolvable:$true] %s781
      %787 = dma.vmem_to_hbm [thread:$0]  %s782, 512, %s4, [#allocation4], 256, 256, 16
    $region37: #{tpu_custom_call.1} parent=1 // pred_fallthru
      _
    // Predicated region
    $region38: #{tpu_custom_call.1} parent=1 // pred_check
      _
    $region39: #{tpu_custom_call.1} parent=1 // pred_check_branch
      %789 = sbr.rel (0) target = $region41
    $region40: #{tpu_custom_call.1} parent=1 // pred_region
      %790 = dma.done [#allocation4], 512
    $region41: #{tpu_custom_call.1} parent=1 // pred_fallthru
      _
    %791 = vsyncpa [#allocation3], 1
    %792 = vsyncpa [#allocation6], 1
    %793 = vsyncpa [#allocation9], 1
    %794 = vsyncpa [#allocation4], 1

</llo_original>
